<compile_context>
chip_gen: v7x
topology: tpu7x:2x2x1
jax: 0.10.0
libtpu: 0.0.40
codegen_flags: <defaults>
</compile_context>

<pallas_src>
from functools import partial

import jax
import jax.numpy as jnp
from jax.experimental import pallas as pl
from jax.experimental.pallas import tpu as pltpu

EPS = 1e-5
HPAD = 64            # hidden dim (50) padded to a multiple of 8 sublanes
PCOLS = 8            # packed parameter columns
VMEM_LIMIT = 32 * 1024 * 1024   # safe on v5e/v6e (128 MiB) and v7x (64 MiB physical)


def _round_up(x, m):
    return (x + m - 1) // m * m


# ---------------------------------------------------------------------------
# Packed parameter layout: params[:, c]  (shape (HPAD, PCOLS), f32)
#   c=0: w1[input 0, :]   c=1: w1[input 1, :]   c=2: b1
#   c=3: gamma            c=4: beta             c=5: w2[:, 0]
#   c=6: b2 (broadcast)   c=7: zero padding
# ---------------------------------------------------------------------------


def _fused_single_tile_kernel(xT_ref, params_ref, o_ref, *, batch):
    """nt == 1: whole (zero-padded) batch in one tile; stats + forward fused."""
    w1c0 = params_ref[:, 0:1]
    w1c1 = params_ref[:, 1:2]
    b1 = params_ref[:, 2:3]
    gamma = params_ref[:, 3:4]
    beta = params_ref[:, 4:5]
    w2c = params_ref[:, 5:6]
    b2 = params_ref[0:1, 6:7]

    x0 = xT_ref[0:1, :]
    x1 = xT_ref[1:2, :]
    g = w1c0 * x0 + w1c1 * x1                 # (HPAD, TB) layer-1 pre-bias acts (VPU)

    # Full-batch statistics.  Padded lanes hold x == 0 -> g == 0, so they add
    # nothing to the sums; normalizing by 1/batch (not 1/TB) is exact.
    inv_b = jnp.float32(1.0 / batch)
    mean_g = jnp.sum(g, axis=1, keepdims=True) * inv_b
    var = jnp.sum(g * g, axis=1, keepdims=True) * inv_b - mean_g * mean_g
    inv_std = jax.lax.rsqrt(var + EPS)
    scale = gamma * inv_std
    shift = beta - (mean_g + b1) * scale
    fb = b1 * scale + shift                   # BN folded into the layer-1 bias

    h = jnp.maximum(g * scale + fb, 0.0)      # BN + ReLU (reuses g, no recompute)
    z = jnp.sum(h * w2c, axis=0, keepdims=True) + b2   # Linear(50->1): XLU reduce
    o_ref[...] = 0.5 * (jnp.tanh(0.5 * z) + 1.0)        # sigmoid via tanh (EUP)


def _bn_stats_kernel(xT_ref, params_ref, part_ref, sum_sc, ssq_sc):
    """Pass 1: per-core accumulation of per-channel sum / sum-of-squares.

    grid = (NSTATS, nt_c) with ("parallel", "arbitrary") semantics; each stats
    core covers nt_c batch tiles and writes one (HPAD, 2) partial at its last
    step.  xT is zero-padded beyond the real batch, so no lane mask is needed.
    """
    t = pl.program_id(1)
    nt = pl.num_programs(1)

    @pl.when(t == 0)
    def _init():
        sum_sc[...] = jnp.zeros_like(sum_sc)
        ssq_sc[...] = jnp.zeros_like(ssq_sc)

    w1c0 = params_ref[:, 0:1]
    w1c1 = params_ref[:, 1:2]
    x0 = xT_ref[0:1, :]
    x1 = xT_ref[1:2, :]
    g = w1c0 * x0 + w1c1 * x1                 # (HPAD, TB), VPU only

    # Direct column accumulators in VMEM scratch (no per-step concat, no
    # output read-modify-write).
    sum_sc[...] += jnp.sum(g, axis=1, keepdims=True)
    ssq_sc[...] += jnp.sum(g * g, axis=1, keepdims=True)

    @pl.when(t == nt - 1)
    def _store():
        part_ref[:, 0:1] = sum_sc[...]
        part_ref[:, 1:2] = ssq_sc[...]


def _forward_kernel(xT_ref, params_ref, part_ref, o_ref, *, batch):
    """Pass 2: finalize BN into folded layer-1 params (O(HPAD)), then the tile
    forward pass: fused Linear1+BN, ReLU, Linear2, sigmoid."""
    w1c0 = params_ref[:, 0:1]
    w1c1 = params_ref[:, 1:2]
    b1 = params_ref[:, 2:3]
    gamma = params_ref[:, 3:4]
    beta = params_ref[:, 4:5]
    w2c = params_ref[:, 5:6]
    b2 = params_ref[0:1, 6:7]

    # Combine per-core partial sums (1 or 2 of them; static unroll).
    tot = part_ref[0]
    for c in range(1, part_ref.shape[0]):
        tot = tot + part_ref[c]

    inv_b = jnp.float32(1.0 / batch)
    mean_g = tot[:, 0:1] * inv_b
    var = tot[:, 1:2] * inv_b - mean_g * mean_g   # biased variance (training BN)
    inv_std = jax.lax.rsqrt(var + EPS)
    scale = gamma * inv_std
    shift = beta - (mean_g + b1) * scale
    fw0 = w1c0 * scale                            # BN folded into layer-1 weights
    fw1 = w1c1 * scale
    fb = b1 * scale + shift

    x0 = xT_ref[0:1, :]
    x1 = xT_ref[1:2, :]
    h = jnp.maximum(fw0 * x0 + fw1 * x1 + fb, 0.0)        # Linear1 + BN + ReLU
    z = jnp.sum(h * w2c, axis=0, keepdims=True) + b2       # Linear(50->1)
    o_ref[...] = 0.5 * (jnp.tanh(0.5 * z) + 1.0)


def mlp_forward(x, w1, b1, gamma, beta, w2, b2, *, tb_max=4096):
    """x: (B, 2) f32.  w1: (2, 50), b1/gamma/beta: (50,), w2: (50, 1), b2: (1,).

    tb_max: lane-tile size (multiple of 128); default 4096, sweepable 2048-8192.
    """
    f32 = jnp.float32
    B, IN = x.shape
    assert IN == 2
    HID = w1.shape[1]
    assert HID <= HPAD and HPAD % 8 == 0

    # Batch tiling: lane-dense tiles (multiple of 128).
    TB = _round_up(min(tb_max, _round_up(B, 128)), 128)
    Bpad = _round_up(B, TB)
    nt = Bpad // TB

    # ---- pack all parameters into one (HPAD, PCOLS) array (single DMA) ----
    def padh(v):
        v = v.reshape(-1).astype(f32)
        return jnp.pad(v, (0, HPAD - v.shape[0]))

    params = jnp.stack(
        [padh(w1[0]),                                    # col 0
         padh(w1[1]),                                    # col 1
         padh(b1),                                       # col 2
         padh(gamma),                                    # col 3
         padh(beta),                                     # col 4
         padh(w2[:, 0]),                                 # col 5
         jnp.full((HPAD,), b2.reshape(()).astype(f32)),  # col 6
         jnp.zeros((HPAD,), f32)],                       # col 7 (pad)
        axis=1)                                          # (HPAD, PCOLS)

    # Lane-major input (2, Bpad), ZERO-padded beyond B.  The kernels rely on
    # padded lanes contributing exactly 0 to the BN sums (no lane mask) and on
    # normalizing by 1/B.  XLA fuses the pad+transpose into one small copy.
    # TODO(synk): for very large B this is one extra HBM pass over x (~5-10%);
    # could be folded into the producer or transposed in-kernel on the idle XLU.
    xT = jnp.pad(x.astype(f32), ((0, Bpad - B), (0, 0))).T

    def cparams(sem):
        return pltpu.CompilerParams(dimension_semantics=sem,
                                    vmem_limit_bytes=VMEM_LIMIT)

    if nt == 1:
        # Single fused kernel: one launch, no stats HBM round trip.
        out_padded = pl.pallas_call(
            partial(_fused_single_tile_kernel, batch=B),
            out_shape=jax.ShapeDtypeStruct((1, Bpad), f32),
            grid=(1,),
            in_specs=[pl.BlockSpec((2, TB), lambda i: (0, 0)),
                      pl.BlockSpec((HPAD, PCOLS), lambda i: (0, 0))],
            out_specs=pl.BlockSpec((1, TB), lambda i: (0, 0)),
            compiler_params=cparams(("arbitrary",)),
        )(xT, params)
        return out_padded[0, :B].reshape(B, 1)

    # ---- pass 1: full-batch BN statistics -------------------------------
    # Leading "parallel" axis of size 2 (when nt is even) lets v7x's two
    # TensorCores each reduce half of the batch tiles; on 1-TC chips it is
    # just a serial loop.  NSTATS=1 when nt is odd (no wasted zero tiles).
    NSTATS = 2 if nt % 2 == 0 else 1
    nt_c = nt // NSTATS

    partials = pl.pallas_call(
        _bn_stats_kernel,
        out_shape=jax.ShapeDtypeStruct((NSTATS, HPAD, 2), f32),
        grid=(NSTATS, nt_c),
        in_specs=[pl.BlockSpec((2, TB), lambda c, t: (0, c * nt_c + t)),
                  pl.BlockSpec((HPAD, PCOLS), lambda c, t: (0, 0))],
        out_specs=pl.BlockSpec((None, HPAD, 2), lambda c, t: (c, 0, 0)),
        scratch_shapes=[pltpu.VMEM((HPAD, 1), f32),
                        pltpu.VMEM((HPAD, 1), f32)],
        compiler_params=cparams(("parallel", "arbitrary")),
    )(xT, params)

    # ---- pass 2: BN-folded forward pass, batch tiles independent ---------
    out_padded = pl.pallas_call(
        partial(_forward_kernel, batch=B),
        out_shape=jax.ShapeDtypeStruct((1, Bpad), f32),
        grid=(nt,),
        in_specs=[pl.BlockSpec((2, TB), lambda t: (0, t)),
                  pl.BlockSpec((HPAD, PCOLS), lambda t: (0, 0)),
                  pl.BlockSpec((NSTATS, HPAD, 2), lambda t: (0, 0, 0))],
        out_specs=pl.BlockSpec((1, TB), lambda t: (0, t)),
        compiler_params=cparams(("parallel",)),
    )(xT, params, partials)

    return out_padded[0, :B].reshape(B, 1)


def reference_forward(x, w1, b1, gamma, beta, w2, b2):
    h = x @ w1 + b1
    mean = jnp.mean(h, axis=0, keepdims=True)
    var = jnp.mean((h - mean) ** 2, axis=0, keepdims=True)
    h = (h - mean) / jnp.sqrt(var + EPS) * gamma + beta
    h = jnp.maximum(h, 0.0)
    z = h @ w2 + b2
    return jax.nn.sigmoid(z)


if __name__ == "__main__":
    IN, HID, OUT = 2, 50, 1   # matches MLP.__init__

    key = jax.random.PRNGKey(0)
    kx, kw1, kb1, kw2, kb2 = jax.random.split(key, 5)

    # PyTorch-style uniform(-1/sqrt(fan_in), 1/sqrt(fan_in)) init
    lim1 = IN ** -0.5
    lim2 = HID ** -0.5
    w1 = jax.random.uniform(kw1, (IN, HID), jnp.float32, -lim1, lim1)
    b1 = jax.random.uniform(kb1, (HID,), jnp.float32, -lim1, lim1)
    gamma = jnp.ones((HID,), jnp.float32)
    beta = jnp.zeros((HID,), jnp.float32)
    w2 = jax.random.uniform(kw2, (HID, OUT), jnp.float32, -lim2, lim2)
    b2 = jax.random.uniform(kb2, (OUT,), jnp.float32, -lim2, lim2)

    # Primary small-shape test (B=8): exercises the fused single-tile path.
    # The extra configs (small tb_max to force multiple tiles) exercise the
    # two-pass path with both NSTATS=2 (even nt) and NSTATS=1 (odd nt).
    configs = [
        (8, dict()),                 # nt == 1  -> fused single kernel
        (900, dict(tb_max=256)),     # nt == 4  -> two-pass, 2 stats cores
        (700, dict(tb_max=256)),     # nt == 3  -> two-pass, 1 stats core
    ]
    for B, kwargs in configs:
        xb = jax.random.normal(kx, (B, IN), dtype=jnp.float32)
        out = mlp_forward(xb, w1, b1, gamma, beta, w2, b2, **kwargs)
        out = jax.block_until_ready(out)
        ref = reference_forward(xb, w1, b1, gamma, beta, w2, b2)
        assert out.shape == (B, OUT)
        assert jnp.allclose(out, ref, atol=1e-5, rtol=1e-5), (B, out, ref)

    print("KERNEL_OK")
</pallas_src>

<mosaic_0001>
module attributes {stable_mosaic.version = 11 : i64} {
  func.func @_fused_single_tile_kernel(%arg0: i32, %arg1: memref<2x128xf32, #tpu.memory_space<vmem>>, %arg2: memref<64x8xf32, #tpu.memory_space<vmem>>, %arg3: memref<1x128xf32, #tpu.memory_space<vmem>>) attributes {dimension_semantics = [#tpu.dimension_semantics<arbitrary>], iteration_bounds = array<i64: 1>, scalar_prefetch = 0 : i64, scratch_operands = 0 : i64, tpu.core_type = #tpu.core_type<tc>, window_params = [{pipeline_mode = #tpu.pipeline_mode<synchronous>, transform_indices = @transform_0, window_bounds = array<i64: 2, 128>}, {pipeline_mode = #tpu.pipeline_mode<synchronous>, transform_indices = @transform_1, window_bounds = array<i64: 64, 8>}, {pipeline_mode = #tpu.pipeline_mode<synchronous>, transform_indices = @transform_2, window_bounds = array<i64: 1, 128>}]} {
    %c0 = arith.constant 0 : index
    %c0_0 = arith.constant 0 : index
    %0 = vector.load %arg2[%c0, %c0_0] : memref<64x8xf32, #tpu.memory_space<vmem>>, vector<64x1xf32>
    %c0_1 = arith.constant 0 : index
    %c1 = arith.constant 1 : index
    %1 = vector.load %arg2[%c0_1, %c1] : memref<64x8xf32, #tpu.memory_space<vmem>>, vector<64x1xf32>
    %c0_2 = arith.constant 0 : index
    %c2 = arith.constant 2 : index
    %2 = vector.load %arg2[%c0_2, %c2] : memref<64x8xf32, #tpu.memory_space<vmem>>, vector<64x1xf32>
    %c0_3 = arith.constant 0 : index
    %c3 = arith.constant 3 : index
    %3 = vector.load %arg2[%c0_3, %c3] : memref<64x8xf32, #tpu.memory_space<vmem>>, vector<64x1xf32>
    %c0_4 = arith.constant 0 : index
    %c4 = arith.constant 4 : index
    %4 = vector.load %arg2[%c0_4, %c4] : memref<64x8xf32, #tpu.memory_space<vmem>>, vector<64x1xf32>
    %c0_5 = arith.constant 0 : index
    %c5 = arith.constant 5 : index
    %5 = vector.load %arg2[%c0_5, %c5] : memref<64x8xf32, #tpu.memory_space<vmem>>, vector<64x1xf32>
    %c0_6 = arith.constant 0 : index
    %c6 = arith.constant 6 : index
    %6 = vector.load %arg2[%c0_6, %c6] : memref<64x8xf32, #tpu.memory_space<vmem>>, vector<1x1xf32>
    %c0_7 = arith.constant 0 : index
    %c0_8 = arith.constant 0 : index
    %7 = vector.load %arg1[%c0_7, %c0_8] : memref<2x128xf32, #tpu.memory_space<vmem>>, vector<1x128xf32>
    %c1_9 = arith.constant 1 : index
    %c0_10 = arith.constant 0 : index
    %8 = vector.load %arg1[%c1_9, %c0_10] : memref<2x128xf32, #tpu.memory_space<vmem>>, vector<1x128xf32>
    %9 = vector.broadcast %0 : vector<64x1xf32> to vector<64x128xf32>
    %10 = vector.broadcast %7 : vector<1x128xf32> to vector<64x128xf32>
    %11 = arith.mulf %9, %10 : vector<64x128xf32>
    %12 = vector.broadcast %1 : vector<64x1xf32> to vector<64x128xf32>
    %13 = vector.broadcast %8 : vector<1x128xf32> to vector<64x128xf32>
    %14 = arith.mulf %12, %13 : vector<64x128xf32>
    %15 = arith.addf %11, %14 : vector<64x128xf32>
    %cst = arith.constant dense<0.000000e+00> : vector<64xf32>
    %16 = vector.multi_reduction <add>, %15, %cst [1] : vector<64x128xf32> to vector<64xf32>
    %17 = vector.shape_cast %16 : vector<64xf32> to vector<64x1xf32>
    %cst_11 = arith.constant 1.250000e-01 : f32
    %18 = vector.broadcast %cst_11 : f32 to vector<64x1xf32>
    %19 = arith.mulf %17, %18 : vector<64x1xf32>
    %20 = arith.mulf %15, %15 : vector<64x128xf32>
    %cst_12 = arith.constant dense<0.000000e+00> : vector<64xf32>
    %21 = vector.multi_reduction <add>, %20, %cst_12 [1] : vector<64x128xf32> to vector<64xf32>
    %22 = vector.shape_cast %21 : vector<64xf32> to vector<64x1xf32>
    %cst_13 = arith.constant 1.250000e-01 : f32
    %23 = vector.broadcast %cst_13 : f32 to vector<64x1xf32>
    %24 = arith.mulf %22, %23 : vector<64x1xf32>
    %25 = arith.mulf %19, %19 : vector<64x1xf32>
    %26 = arith.subf %24, %25 : vector<64x1xf32>
    %cst_14 = arith.constant 9.99999974E-6 : f32
    %27 = vector.broadcast %cst_14 : f32 to vector<64x1xf32>
    %28 = arith.addf %26, %27 : vector<64x1xf32>
    %29 = math.rsqrt %28 : vector<64x1xf32>
    %30 = arith.mulf %3, %29 : vector<64x1xf32>
    %31 = arith.addf %19, %2 : vector<64x1xf32>
    %32 = arith.mulf %31, %30 : vector<64x1xf32>
    %33 = arith.subf %4, %32 : vector<64x1xf32>
    %34 = arith.mulf %2, %30 : vector<64x1xf32>
    %35 = arith.addf %34, %33 : vector<64x1xf32>
    %36 = vector.broadcast %30 : vector<64x1xf32> to vector<64x128xf32>
    %37 = arith.mulf %15, %36 : vector<64x128xf32>
    %38 = vector.broadcast %35 : vector<64x1xf32> to vector<64x128xf32>
    %39 = arith.addf %37, %38 : vector<64x128xf32>
    %cst_15 = arith.constant 0.000000e+00 : f32
    %40 = vector.broadcast %cst_15 : f32 to vector<64x128xf32>
    %41 = arith.maximumf %39, %40 : vector<64x128xf32>
    %42 = vector.broadcast %5 : vector<64x1xf32> to vector<64x128xf32>
    %43 = arith.mulf %41, %42 : vector<64x128xf32>
    %cst_16 = arith.constant dense<0.000000e+00> : vector<128xf32>
    %44 = vector.multi_reduction <add>, %43, %cst_16 [0] : vector<64x128xf32> to vector<128xf32>
    %45 = vector.shape_cast %44 : vector<128xf32> to vector<1x128xf32>
    %46 = vector.broadcast %6 : vector<1x1xf32> to vector<1x128xf32>
    %47 = arith.addf %45, %46 : vector<1x128xf32>
    %cst_17 = arith.constant 5.000000e-01 : f32
    %48 = vector.broadcast %cst_17 : f32 to vector<1x128xf32>
    %49 = arith.mulf %48, %47 : vector<1x128xf32>
    %50 = math.tanh %49 : vector<1x128xf32>
    %cst_18 = arith.constant 1.000000e+00 : f32
    %51 = vector.broadcast %cst_18 : f32 to vector<1x128xf32>
    %52 = arith.addf %50, %51 : vector<1x128xf32>
    %cst_19 = arith.constant 5.000000e-01 : f32
    %53 = vector.broadcast %cst_19 : f32 to vector<1x128xf32>
    %54 = arith.mulf %53, %52 : vector<1x128xf32>
    %c0_20 = arith.constant 0 : index
    %c0_21 = arith.constant 0 : index
    %55 = vector.load %arg3[%c0_20, %c0_21] : memref<1x128xf32, #tpu.memory_space<vmem>>, vector<1x128xf32>
    tpu.vector_store %arg3[%c0_20, %c0_21], %54 {strides = array<i32>} : memref<1x128xf32, #tpu.memory_space<vmem>>, vector<1x128xf32>,
    return
  }
  func.func @transform_0(%arg0: i32) -> (i32, i32) {
    %c0_i32 = arith.constant 0 : i32
    %c0_i32_0 = arith.constant 0 : i32
    %c0_i32_1 = arith.constant 0 : i32
    return %c0_i32, %c0_i32_0 : i32, i32
  }
  func.func @transform_1(%arg0: i32) -> (i32, i32) {
    %c0_i32 = arith.constant 0 : i32
    %c0_i32_0 = arith.constant 0 : i32
    %c0_i32_1 = arith.constant 0 : i32
    return %c0_i32, %c0_i32_0 : i32, i32
  }
  func.func @transform_2(%arg0: i32) -> (i32, i32) {
    %c0_i32 = arith.constant 0 : i32
    %c0_i32_0 = arith.constant 0 : i32
    %c0_i32_1 = arith.constant 0 : i32
    return %c0_i32, %c0_i32_0 : i32, i32
  }
}

</mosaic_0001>

<llo_original>
// kernel: tpu_custom_call.1
$region0: #{tpu_custom_call.1}
  #allocation0 [shape = 'u32[]', space=smem, size = 0x4, offset = 0x4, fixed_abs, tag = 'smem constant byte address 0x4 - core index']
  #allocation1 [shape = 'u32[144,128]{1,0:T(1,128)}', space=vmem, size = 0x12000, scoped, tag = 'internal scratch']
  %s0 = inlined_call_operand.vmem [shape: f32[2,128], index: 0, kind: input, shape index: {}]
  %s1 = inlined_call_operand.vmem [shape: f32[64,8], index: 1, kind: input, shape index: {}]
  %s2 = inlined_call_operand.hbm [shape: f32[1,128], index: 2, kind: output, shape index: {}]
  %s3 = sld [smem:[#allocation0]]
  $region18: #{tpu_custom_call.1} parent=0
    _
  %s5 = ssub.s32 1, %s3
  %s6 = scalar_select 0, %s5, %s3
  $region1: #{tpu_custom_call.1} parent=0
    #allocation2 [shape = 'u8[512]{0}', space=vmem, size = 0x400, scoped, tag = 'output window, operand 0, single buffered']
    #allocation3 [shape = 's32[1]{0}', space=sflag, size = 0x4, scoped, tag = 'scoped memory for tpu_custom_call.1']
    %7 = vsyncpa [#allocation3], 0
    // Predicated region
    $region2: #{tpu_custom_call.1} parent=1 // pred_check
      _
    $region3: #{tpu_custom_call.1} parent=1 // pred_check_branch
      %9 = sbr.rel (0) target = $region5
    $region4: #{tpu_custom_call.1} parent=1 // pred_region
      _
    $region5: #{tpu_custom_call.1} parent=1 // pred_fallthru
      _
    // Predicated region
    $region6: #{tpu_custom_call.1} parent=1 // pred_check
      _
    $region7: #{tpu_custom_call.1} parent=1 // pred_check_branch
      %11 = sbr.rel (0) target = $region9
    $region8: #{tpu_custom_call.1} parent=1 // pred_region
      _
    $region9: #{tpu_custom_call.1} parent=1 // pred_fallthru
      _
    %v12 = vld [vmem:[%s1] sm:$0xff]
    %v13 = vld [vmem:[%s1 + $0x8] sm:$0xff]
    %v14 = vld [vmem:[%s1 + $0x10] sm:$0xff]
    %v15 = vld [vmem:[%s1 + $0x18] sm:$0xff]
    %v16 = vld [vmem:[%s1 + $0x20] sm:$0xff]
    %v17 = vld [vmem:[%s1 + $0x28] sm:$0xff]
    %v18 = vld [vmem:[%s1 + $0x30] sm:$0xff]
    %v19 = vld [vmem:[%s1 + $0x38] sm:$0xff]
    %v20 = vld [vmem:[%s1] sm:$0x1]
    %v21 = vld [vmem:[%s0] sm:$0x1]
    %v22 = vld [vmem:[%s0 + $0x1] sm:$0x1]
    %24 = vset.pattern.permute.xlu0 0
    %25 = vperm.xlu0 %24, %v12
    %v26 = vpop.permute.xlu0 %25
    %29 = vset.pattern.permute.xlu0 0
    %30 = vperm.xlu0 %29, %v13
    %v31 = vpop.permute.xlu0 %30
    %34 = vset.pattern.permute.xlu0 0
    %35 = vperm.xlu0 %34, %v14
    %v36 = vpop.permute.xlu0 %35
    %39 = vset.pattern.permute.xlu0 0
    %40 = vperm.xlu0 %39, %v15
    %v41 = vpop.permute.xlu0 %40
    %44 = vset.pattern.permute.xlu0 0
    %45 = vperm.xlu0 %44, %v16
    %v46 = vpop.permute.xlu0 %45
    %49 = vset.pattern.permute.xlu0 0
    %50 = vperm.xlu0 %49, %v17
    %v51 = vpop.permute.xlu0 %50
    %54 = vset.pattern.permute.xlu0 0
    %55 = vperm.xlu0 %54, %v18
    %v56 = vpop.permute.xlu0 %55
    %59 = vset.pattern.permute.xlu0 0
    %60 = vperm.xlu0 %59, %v19
    %v61 = vpop.permute.xlu0 %60
    %v63 = vlaneseq
    %v64 = vshrl.u32 %v63, 7
    %v65 = vsub.s32 0, %v64
    %v66 = vrot.slane %v21, %v65
    %v67 = vmul.f32 %v26, %v66
    %v68 = vmul.f32 %v31, %v66
    %v69 = vmul.f32 %v36, %v66
    %v70 = vmul.f32 %v41, %v66
    %v71 = vmul.f32 %v46, %v66
    %v72 = vmul.f32 %v51, %v66
    %v73 = vmul.f32 %v56, %v66
    %v74 = vmul.f32 %v61, %v66
    %75 = vset.pattern.permute.xlu0 1
    %76 = vperm.xlu0 %75, %v12
    %v77 = vpop.permute.xlu0 %76
    %79 = vset.pattern.permute.xlu0 1
    %80 = vperm.xlu0 %79, %v13
    %v81 = vpop.permute.xlu0 %80
    %83 = vset.pattern.permute.xlu0 1
    %84 = vperm.xlu0 %83, %v14
    %v85 = vpop.permute.xlu0 %84
    %87 = vset.pattern.permute.xlu0 1
    %88 = vperm.xlu0 %87, %v15
    %v89 = vpop.permute.xlu0 %88
    %91 = vset.pattern.permute.xlu0 1
    %92 = vperm.xlu0 %91, %v16
    %v93 = vpop.permute.xlu0 %92
    %95 = vset.pattern.permute.xlu0 1
    %96 = vperm.xlu0 %95, %v17
    %v97 = vpop.permute.xlu0 %96
    %99 = vset.pattern.permute.xlu0 1
    %100 = vperm.xlu0 %99, %v18
    %v101 = vpop.permute.xlu0 %100
    %103 = vset.pattern.permute.xlu0 1
    %104 = vperm.xlu0 %103, %v19
    %v105 = vpop.permute.xlu0 %104
    %v107 = vlaneseq
    %v108 = vshrl.u32 %v107, 7
    %v109 = vsub.s32 0, %v108
    %v110 = vrot.slane %v22, %v109
    %v111 = vmul.f32 %v77, %v110
    %v112 = vmul.f32 %v81, %v110
    %v113 = vmul.f32 %v85, %v110
    %v114 = vmul.f32 %v89, %v110
    %v115 = vmul.f32 %v93, %v110
    %v116 = vmul.f32 %v97, %v110
    %v117 = vmul.f32 %v101, %v110
    %v118 = vmul.f32 %v105, %v110
    %v119 = vadd.f32 %v67, %v111
    %v120 = vadd.f32 %v68, %v112
    %v121 = vadd.f32 %v69, %v113
    %v122 = vadd.f32 %v70, %v114
    %v123 = vadd.f32 %v71, %v115
    %v124 = vadd.f32 %v72, %v116
    %v125 = vadd.f32 %v73, %v117
    %v126 = vadd.f32 %v74, %v118
    %127 = vadd.xlane.f32.xlu0 %v119
    %v128 = vpop.xlane.xlu0 %127
    %129 = vadd.xlane.f32.xlu0 %v120
    %v130 = vpop.xlane.xlu0 %129
    %131 = vadd.xlane.f32.xlu0 %v121
    %v132 = vpop.xlane.xlu0 %131
    %133 = vadd.xlane.f32.xlu0 %v122
    %v134 = vpop.xlane.xlu0 %133
    %135 = vadd.xlane.f32.xlu0 %v123
    %v136 = vpop.xlane.xlu0 %135
    %137 = vadd.xlane.f32.xlu0 %v124
    %v138 = vpop.xlane.xlu0 %137
    %139 = vadd.xlane.f32.xlu0 %v125
    %v140 = vpop.xlane.xlu0 %139
    %141 = vadd.xlane.f32.xlu0 %v126
    %v142 = vpop.xlane.xlu0 %141
    %v143 = vmul.f32 %v128, 0.125
    %v144 = vmul.f32 %v130, 0.125
    %v145 = vmul.f32 %v132, 0.125
    %v146 = vmul.f32 %v134, 0.125
    %v147 = vmul.f32 %v136, 0.125
    %v148 = vmul.f32 %v138, 0.125
    %v149 = vmul.f32 %v140, 0.125
    %v150 = vmul.f32 %v142, 0.125
    %v151 = vmul.f32 %v119, %v119
    %v152 = vmul.f32 %v120, %v120
    %v153 = vmul.f32 %v121, %v121
    %v154 = vmul.f32 %v122, %v122
    %v155 = vmul.f32 %v123, %v123
    %v156 = vmul.f32 %v124, %v124
    %v157 = vmul.f32 %v125, %v125
    %v158 = vmul.f32 %v126, %v126
    %159 = vadd.xlane.f32.xlu0 %v151
    %v160 = vpop.xlane.xlu0 %159
    %161 = vadd.xlane.f32.xlu0 %v152
    %v162 = vpop.xlane.xlu0 %161
    %163 = vadd.xlane.f32.xlu0 %v153
    %v164 = vpop.xlane.xlu0 %163
    %165 = vadd.xlane.f32.xlu0 %v154
    %v166 = vpop.xlane.xlu0 %165
    %167 = vadd.xlane.f32.xlu0 %v155
    %v168 = vpop.xlane.xlu0 %167
    %169 = vadd.xlane.f32.xlu0 %v156
    %v170 = vpop.xlane.xlu0 %169
    %171 = vadd.xlane.f32.xlu0 %v157
    %v172 = vpop.xlane.xlu0 %171
    %173 = vadd.xlane.f32.xlu0 %v158
    %v174 = vpop.xlane.xlu0 %173
    %v175 = vmul.f32 %v160, 0.125
    %v176 = vmul.f32 %v162, 0.125
    %v177 = vmul.f32 %v164, 0.125
    %v178 = vmul.f32 %v166, 0.125
    %v179 = vmul.f32 %v168, 0.125
    %v180 = vmul.f32 %v170, 0.125
    %v181 = vmul.f32 %v172, 0.125
    %v182 = vmul.f32 %v174, 0.125
    %v183 = vmul.f32 %v143, %v143
    %v184 = vmul.f32 %v144, %v144
    %v185 = vmul.f32 %v145, %v145
    %v186 = vmul.f32 %v146, %v146
    %v187 = vmul.f32 %v147, %v147
    %v188 = vmul.f32 %v148, %v148
    %v189 = vmul.f32 %v149, %v149
    %v190 = vmul.f32 %v150, %v150
    %v191 = vsub.f32 %v175, %v183
    %v192 = vsub.f32 %v176, %v184
    %v193 = vsub.f32 %v177, %v185
    %v194 = vsub.f32 %v178, %v186
    %v195 = vsub.f32 %v179, %v187
    %v196 = vsub.f32 %v180, %v188
    %v197 = vsub.f32 %v181, %v189
    %v198 = vsub.f32 %v182, %v190
    %v199 = vadd.f32 %v191, 1e-05
    %v200 = vadd.f32 %v192, 1e-05
    %v201 = vadd.f32 %v193, 1e-05
    %v202 = vadd.f32 %v194, 1e-05
    %v203 = vadd.f32 %v195, 1e-05
    %v204 = vadd.f32 %v196, 1e-05
    %v205 = vadd.f32 %v197, 1e-05
    %v206 = vadd.f32 %v198, 1e-05
    %v207 = vrsqrt.pop %v199
    %v208 = vrsqrt.pop %v200
    %v209 = vrsqrt.pop %v201
    %v210 = vrsqrt.pop %v202
    %v211 = vrsqrt.pop %v203
    %v212 = vrsqrt.pop %v204
    %v213 = vrsqrt.pop %v205
    %v214 = vrsqrt.pop %v206
    %v215 = vmul.f32 %v12, %v207
    %v216 = vmul.f32 %v13, %v208
    %v217 = vmul.f32 %v14, %v209
    %v218 = vmul.f32 %v15, %v210
    %v219 = vmul.f32 %v16, %v211
    %v220 = vmul.f32 %v17, %v212
    %v221 = vmul.f32 %v18, %v213
    %v222 = vmul.f32 %v19, %v214
    %v223 = vadd.f32 %v143, %v12
    %v224 = vadd.f32 %v144, %v13
    %v225 = vadd.f32 %v145, %v14
    %v226 = vadd.f32 %v146, %v15
    %v227 = vadd.f32 %v147, %v16
    %v228 = vadd.f32 %v148, %v17
    %v229 = vadd.f32 %v149, %v18
    %v230 = vadd.f32 %v150, %v19
    %239 = vrot.lane.b32.xlu0 %v215, 127
    %v240 = vpop.permute.xlu0 %239
    %241 = vrot.lane.b32.xlu0 %v216, 127
    %v242 = vpop.permute.xlu0 %241
    %243 = vrot.lane.b32.xlu0 %v217, 127
    %v244 = vpop.permute.xlu0 %243
    %245 = vrot.lane.b32.xlu0 %v218, 127
    %v246 = vpop.permute.xlu0 %245
    %247 = vrot.lane.b32.xlu0 %v219, 127
    %v248 = vpop.permute.xlu0 %247
    %249 = vrot.lane.b32.xlu0 %v220, 127
    %v250 = vpop.permute.xlu0 %249
    %251 = vrot.lane.b32.xlu0 %v221, 127
    %v252 = vpop.permute.xlu0 %251
    %253 = vrot.lane.b32.xlu0 %v222, 127
    %v254 = vpop.permute.xlu0 %253
    %v263 = vmul.f32 %v223, %v240
    %v264 = vmul.f32 %v224, %v242
    %v265 = vmul.f32 %v225, %v244
    %v266 = vmul.f32 %v226, %v246
    %v267 = vmul.f32 %v227, %v248
    %v268 = vmul.f32 %v228, %v250
    %v269 = vmul.f32 %v229, %v252
    %v270 = vmul.f32 %v230, %v254
    %279 = vrot.lane.b32.xlu0 %v263, 2
    %v280 = vpop.permute.xlu0 %279
    %281 = vrot.lane.b32.xlu0 %v264, 2
    %v282 = vpop.permute.xlu0 %281
    %283 = vrot.lane.b32.xlu0 %v265, 2
    %v284 = vpop.permute.xlu0 %283
    %285 = vrot.lane.b32.xlu0 %v266, 2
    %v286 = vpop.permute.xlu0 %285
    %287 = vrot.lane.b32.xlu0 %v267, 2
    %v288 = vpop.permute.xlu0 %287
    %289 = vrot.lane.b32.xlu0 %v268, 2
    %v290 = vpop.permute.xlu0 %289
    %291 = vrot.lane.b32.xlu0 %v269, 2
    %v292 = vpop.permute.xlu0 %291
    %293 = vrot.lane.b32.xlu0 %v270, 2
    %v294 = vpop.permute.xlu0 %293
    %v303 = vsub.f32 %v12, %v280
    %v304 = vsub.f32 %v13, %v282
    %v305 = vsub.f32 %v14, %v284
    %v306 = vsub.f32 %v15, %v286
    %v307 = vsub.f32 %v16, %v288
    %v308 = vsub.f32 %v17, %v290
    %v309 = vsub.f32 %v18, %v292
    %v310 = vsub.f32 %v19, %v294
    %v311 = vmul.f32 %v12, %v240
    %v312 = vmul.f32 %v13, %v242
    %v313 = vmul.f32 %v14, %v244
    %v314 = vmul.f32 %v15, %v246
    %v315 = vmul.f32 %v16, %v248
    %v316 = vmul.f32 %v17, %v250
    %v317 = vmul.f32 %v18, %v252
    %v318 = vmul.f32 %v19, %v254
    %327 = vrot.lane.b32.xlu0 %v303, 126
    %v328 = vpop.permute.xlu0 %327
    %329 = vrot.lane.b32.xlu0 %v304, 126
    %v330 = vpop.permute.xlu0 %329
    %331 = vrot.lane.b32.xlu0 %v305, 126
    %v332 = vpop.permute.xlu0 %331
    %333 = vrot.lane.b32.xlu0 %v306, 126
    %v334 = vpop.permute.xlu0 %333
    %335 = vrot.lane.b32.xlu0 %v307, 126
    %v336 = vpop.permute.xlu0 %335
    %337 = vrot.lane.b32.xlu0 %v308, 126
    %v338 = vpop.permute.xlu0 %337
    %339 = vrot.lane.b32.xlu0 %v309, 126
    %v340 = vpop.permute.xlu0 %339
    %341 = vrot.lane.b32.xlu0 %v310, 126
    %v342 = vpop.permute.xlu0 %341
    %v351 = vadd.f32 %v311, %v328
    %v352 = vadd.f32 %v312, %v330
    %v353 = vadd.f32 %v313, %v332
    %v354 = vadd.f32 %v314, %v334
    %v355 = vadd.f32 %v315, %v336
    %v356 = vadd.f32 %v316, %v338
    %v357 = vadd.f32 %v317, %v340
    %v358 = vadd.f32 %v318, %v342
    %359 = vset.pattern.permute.xlu0 3
    %360 = vperm.xlu0 %359, %v215
    %v361 = vpop.permute.xlu0 %360
    %363 = vset.pattern.permute.xlu0 3
    %364 = vperm.xlu0 %363, %v216
    %v365 = vpop.permute.xlu0 %364
    %367 = vset.pattern.permute.xlu0 3
    %368 = vperm.xlu0 %367, %v217
    %v369 = vpop.permute.xlu0 %368
    %371 = vset.pattern.permute.xlu0 3
    %372 = vperm.xlu0 %371, %v218
    %v373 = vpop.permute.xlu0 %372
    %375 = vset.pattern.permute.xlu0 3
    %376 = vperm.xlu0 %375, %v219
    %v377 = vpop.permute.xlu0 %376
    %379 = vset.pattern.permute.xlu0 3
    %380 = vperm.xlu0 %379, %v220
    %v381 = vpop.permute.xlu0 %380
    %383 = vset.pattern.permute.xlu0 3
    %384 = vperm.xlu0 %383, %v221
    %v385 = vpop.permute.xlu0 %384
    %387 = vset.pattern.permute.xlu0 3
    %388 = vperm.xlu0 %387, %v222
    %v389 = vpop.permute.xlu0 %388
    %v391 = vmul.f32 %v119, %v361
    %v392 = vmul.f32 %v120, %v365
    %v393 = vmul.f32 %v121, %v369
    %v394 = vmul.f32 %v122, %v373
    %v395 = vmul.f32 %v123, %v377
    %v396 = vmul.f32 %v124, %v381
    %v397 = vmul.f32 %v125, %v385
    %v398 = vmul.f32 %v126, %v389
    %400 = vset.pattern.permute.xlu0 2
    %401 = vperm.xlu0 %400, %v351
    %v402 = vpop.permute.xlu0 %401
    %405 = vset.pattern.permute.xlu0 2
    %406 = vperm.xlu0 %405, %v352
    %v407 = vpop.permute.xlu0 %406
    %410 = vset.pattern.permute.xlu0 2
    %411 = vperm.xlu0 %410, %v353
    %v412 = vpop.permute.xlu0 %411
    %415 = vset.pattern.permute.xlu0 2
    %416 = vperm.xlu0 %415, %v354
    %v417 = vpop.permute.xlu0 %416
    %420 = vset.pattern.permute.xlu0 2
    %421 = vperm.xlu0 %420, %v355
    %v422 = vpop.permute.xlu0 %421
    %425 = vset.pattern.permute.xlu0 2
    %426 = vperm.xlu0 %425, %v356
    %v427 = vpop.permute.xlu0 %426
    %430 = vset.pattern.permute.xlu0 2
    %431 = vperm.xlu0 %430, %v357
    %v432 = vpop.permute.xlu0 %431
    %435 = vset.pattern.permute.xlu0 2
    %436 = vperm.xlu0 %435, %v358
    %v437 = vpop.permute.xlu0 %436
    %v439 = vadd.f32 %v391, %v402
    %v440 = vadd.f32 %v392, %v407
    %v441 = vadd.f32 %v393, %v412
    %v442 = vadd.f32 %v394, %v417
    %v443 = vadd.f32 %v395, %v422
    %v444 = vadd.f32 %v396, %v427
    %v445 = vadd.f32 %v397, %v432
    %v446 = vadd.f32 %v398, %v437
    %v447 = vmax.f32 %v439, 0.0
    %v448 = vmax.f32 %v440, 0.0
    %v449 = vmax.f32 %v441, 0.0
    %v450 = vmax.f32 %v442, 0.0
    %v451 = vmax.f32 %v443, 0.0
    %v452 = vmax.f32 %v444, 0.0
    %v453 = vmax.f32 %v445, 0.0
    %v454 = vmax.f32 %v446, 0.0
    %455 = vset.pattern.permute.xlu0 5
    %456 = vperm.xlu0 %455, %v12
    %v457 = vpop.permute.xlu0 %456
    %459 = vset.pattern.permute.xlu0 5
    %460 = vperm.xlu0 %459, %v13
    %v461 = vpop.permute.xlu0 %460
    %463 = vset.pattern.permute.xlu0 5
    %464 = vperm.xlu0 %463, %v14
    %v465 = vpop.permute.xlu0 %464
    %467 = vset.pattern.permute.xlu0 5
    %468 = vperm.xlu0 %467, %v15
    %v469 = vpop.permute.xlu0 %468
    %471 = vset.pattern.permute.xlu0 5
    %472 = vperm.xlu0 %471, %v16
    %v473 = vpop.permute.xlu0 %472
    %475 = vset.pattern.permute.xlu0 5
    %476 = vperm.xlu0 %475, %v17
    %v477 = vpop.permute.xlu0 %476
    %479 = vset.pattern.permute.xlu0 5
    %480 = vperm.xlu0 %479, %v18
    %v481 = vpop.permute.xlu0 %480
    %483 = vset.pattern.permute.xlu0 5
    %484 = vperm.xlu0 %483, %v19
    %v485 = vpop.permute.xlu0 %484
    %v487 = vmul.f32 %v447, %v457
    %v488 = vmul.f32 %v448, %v461
    %v489 = vmul.f32 %v449, %v465
    %v490 = vmul.f32 %v450, %v469
    %v491 = vmul.f32 %v451, %v473
    %v492 = vmul.f32 %v452, %v477
    %v493 = vmul.f32 %v453, %v481
    %v494 = vmul.f32 %v454, %v485
    %v495 = vadd.f32 %v487, %v488
    %v496 = vadd.f32 %v495, %v489
    %v497 = vadd.f32 %v496, %v490
    %v498 = vadd.f32 %v497, %v491
    %v499 = vadd.f32 %v498, %v492
    %v500 = vadd.f32 %v499, %v493
    %v501 = vadd.f32 %v500, %v494
    %v502 = vrot.slane %v501, 4
    %v503 = vadd.f32 %v501, %v502
    %v504 = vrot.slane %v503, 2
    %v505 = vadd.f32 %v503, %v504
    %v506 = vrot.slane %v505, 1
    %v507 = vadd.f32 %v505, %v506
    %509 = vset.pattern.permute.xlu0 6
    %510 = vperm.xlu0 %509, %v20
    %v511 = vpop.permute.xlu0 %510
    %v513 = vadd.f32 %v507, %v511
    %v514 = vmul.f32 %v513, 0.5
    %v515 = vtanh.pop %v514
    %v516 = vadd.f32 %v515, 1.0
    %v517 = vmul.f32 %v516, 0.5
    %518 = vst [vmem:[#allocation2] sm:$0x1] %v517
    // Predicated region
    $region10: #{tpu_custom_call.1} parent=1 // pred_check
      _
    $region11: #{tpu_custom_call.1} parent=1 // pred_check_branch
      %520 = sbr.rel (0) target = $region13
    $region12: #{tpu_custom_call.1} parent=1 // pred_region
      %s522 = ssub.s32 16, 16
      %523 = vsyncadd [#allocation3], %s522
      %s525 = sshll.u32 [#allocation2], 4
      %s526 = int_to_ptr.vmem [resolvable:$true] %s525
      %528 = dma.vmem_to_hbm [thread:$0]  %s526, 16, %s2, [#allocation3]
    $region13: #{tpu_custom_call.1} parent=1 // pred_fallthru
      _
    // Predicated region
    $region14: #{tpu_custom_call.1} parent=1 // pred_check
      _
    $region15: #{tpu_custom_call.1} parent=1 // pred_check_branch
      %530 = sbr.rel (0) target = $region17
    $region16: #{tpu_custom_call.1} parent=1 // pred_region
      %531 = dma.done [#allocation3], 16
    $region17: #{tpu_custom_call.1} parent=1 // pred_fallthru
      _
    %532 = vsyncpa [#allocation3], 1

</llo_original>
